<compile_context>
chip_gen: v6e
topology: v6e:2x2x1
jax: 0.10.0
libtpu: 0.0.40
codegen_flags: <defaults>
</compile_context>

<pallas_src>
import functools

import numpy as np
import jax
import jax.numpy as jnp
from jax.experimental import pallas as pl
from jax.experimental.pallas import tpu as pltpu


# ---------------------------------------------------------------------------
# Kernels
# ---------------------------------------------------------------------------
def _make_ncl_kernel(inv_l):
    """Block = (nb, C, L) with full (C, L); lane axis = L (use when L % 128 == 0)."""

    def kernel(x_ref, w1_ref, w2_ref, o_ref):
        x = x_ref[...]                                                # (nb, C, L) native dtype
        # Pool / MLP / sigmoid in f32 (precision); only the tiny (nb, C) slab is f32.
        pooled = jnp.sum(x.astype(jnp.float32), axis=-1) * inv_l      # (nb, C)
        h = jnp.maximum(
            jnp.dot(pooled, w1_ref[...], preferred_element_type=jnp.float32), 0.0)
        alpha = jax.nn.sigmoid(
            jnp.dot(h, w2_ref[...], preferred_element_type=jnp.float32))
        # Final multiply in the input dtype (bf16 VPU on v6e/v7x; f32 stays f32).
        scale = (1.0 + alpha)[:, :, None].astype(x.dtype)
        o_ref[...] = (x * scale).astype(o_ref.dtype)

    return kernel


def _make_flat_kernel(inv_l):
    """Block = (nb, C*L): lane-dense last dim for small/unaligned L (unmasked stores).

    pool_ref  (C*L, C): one-hot -> per-channel sum as a tiny matmul (x 1/L in f32)
    bcast_ref (C, C*L): one-hot -> broadcast (1 + gate) over each channel's L lanes
    """

    def kernel(x_ref, w1_ref, w2_ref, pool_ref, bcast_ref, o_ref):
        x = x_ref[...]                                                           # (nb, C*L)
        pooled = jnp.dot(x, pool_ref[...],
                         preferred_element_type=jnp.float32) * inv_l             # (nb, C)
        h = jnp.maximum(
            jnp.dot(pooled, w1_ref[...], preferred_element_type=jnp.float32), 0.0)
        alpha = jax.nn.sigmoid(
            jnp.dot(h, w2_ref[...], preferred_element_type=jnp.float32))         # (nb, C)
        gate = jnp.dot(1.0 + alpha, bcast_ref[...],
                       preferred_element_type=jnp.float32)                       # (nb, C*L)
        o_ref[...] = (x * gate.astype(x.dtype)).astype(o_ref.dtype)

    return kernel


# ---------------------------------------------------------------------------
# Helpers
# ---------------------------------------------------------------------------
@functools.lru_cache(maxsize=None)
def _se_helper_mats(c, l, dtype_name):
    """One-hot pool / broadcast matrices, built once per (C, L, dtype)."""
    ch = np.arange(c * l) // l
    onehot = (ch[:, None] == np.arange(c)[None, :])
    pool = jnp.asarray(onehot, dtype=jnp.dtype(dtype_name))    # (C*L, C)
    return pool, pool.T                                        # (C, C*L)


def _choose_block(n, bytes_per_sample, target_bytes, sublane_multiple=1):
    """Pick samples-per-block `nb` and a (possibly padded) batch size `n_pad`.

    * Tiny totals (<= one block target) run as a single grid step.
    * Otherwise prefer exact divisors of n that fit `target_bytes`, with >= 4
      grid steps (even count if possible) so both v7x TensorCores pipeline.
    * If no sublane-aligned divisor works, round nb to `sublane_multiple` and
      pad the batch instead of changing layout.
    """
    total = n * bytes_per_sample
    if total <= target_bytes:
        return n, n
    cands = [d for d in range(1, n + 1)
             if n % d == 0 and (d % sublane_multiple == 0 or d == n)]
    fit = [d for d in cands if d * bytes_per_sample <= target_bytes]
    for good_steps in (lambda s: s >= 4 and s % 2 == 0,
                       lambda s: s >= 4,
                       lambda s: s >= 2):
        good = [d for d in fit if good_steps(n // d)]
        if good:
            return max(good), n
    if fit:
        return max(fit), n
    # No usable exact divisor: aligned block near the target, pad the batch.
    nb = max(sublane_multiple,
             (target_bytes // bytes_per_sample) // sublane_multiple * sublane_multiple)
    while nb > sublane_multiple and pl.cdiv(n, nb) < 2:
        nb -= sublane_multiple
    n_pad = pl.cdiv(n, nb) * nb
    return nb, n_pad


def _compiler_params(block_bytes, extra_bytes=0):
    # ~2 buffers for the input block + 2 for the output block + residents + slack,
    # capped at 48 MiB so v7x (64 MiB physical VMEM) keeps compiler headroom.
    vmem = int(min(48 << 20, max(16 << 20, 4 * block_bytes + extra_bytes + (2 << 20))))
    return pltpu.CompilerParams(
        dimension_semantics=("parallel",),   # batch blocks are independent -> megacore
        vmem_limit_bytes=vmem,
    )


# ---------------------------------------------------------------------------
# Wrapper
# ---------------------------------------------------------------------------
def res_se_layer_1d(x, w1_t, w2_t, *, block_target_bytes=8 << 20, donate_input=False):
    """x: (N, C, L); w1_t: (C, C//r); w2_t: (C//r, C). Returns (N, C, L)."""
    N, C, L = x.shape
    itemsize = jnp.dtype(x.dtype).itemsize
    bytes_per_sample = C * L * itemsize
    # Cap the per-block target so 4 double-buffered blocks stay under the VMEM cap.
    block_target_bytes = min(block_target_bytes, 10 << 20)
    alias = {0: 0} if donate_input else {}

    hdim = w1_t.shape[1]
    cost = pl.CostEstimate(
        flops=int(4 * N * C * hdim + 3 * N * C * L),
        transcendentals=int(N * C),
        bytes_accessed=int(2 * N * C * L * itemsize),
    )

    # TODO(synk): if a single sample's C*L slab ever exceeds the VMEM budget, add an
    # L grid axis with a pl.when-guarded two-phase (pool accumulation, then scale) pass.

    helper_dtype = jnp.bfloat16 if itemsize <= 2 else jnp.float32
    aux_bytes = 2 * (C * L) * C * jnp.dtype(helper_dtype).itemsize
    use_flat = (L % 128 != 0) and (aux_bytes <= (8 << 20))

    if use_flat:
        # Small / lane-sparse L: fold (C, L) -> C*L so the last dim is lane-dense
        # (unmasked vst); pool & broadcast become tiny resident one-hot matmuls.
        nb, n_pad = _choose_block(N, bytes_per_sample, block_target_bytes,
                                  sublane_multiple=8)
        pool_mat, bcast_mat = _se_helper_mats(C, L, jnp.dtype(helper_dtype).name)
        x2d = x.reshape(N, C * L)
        if n_pad != N:
            x2d = jnp.pad(x2d, ((0, n_pad - N), (0, 0)))
        block_bytes = nb * bytes_per_sample
        out2d = pl.pallas_call(
            _make_flat_kernel(1.0 / L),
            out_shape=jax.ShapeDtypeStruct((n_pad, C * L), x.dtype),
            grid_spec=pl.GridSpec(
                grid=(n_pad // nb,),
                in_specs=[
                    pl.BlockSpec((nb, C * L), lambda i: (i, 0)),
                    # Constant block index -> DMA'd once, VMEM-resident across steps.
                    pl.BlockSpec(w1_t.shape, lambda i: (0, 0)),
                    pl.BlockSpec(w2_t.shape, lambda i: (0, 0)),
                    pl.BlockSpec(pool_mat.shape, lambda i: (0, 0)),
                    pl.BlockSpec(bcast_mat.shape, lambda i: (0, 0)),
                ],
                out_specs=pl.BlockSpec((nb, C * L), lambda i: (i, 0)),
            ),
            compiler_params=_compiler_params(block_bytes, aux_bytes),
            cost_estimate=cost,
            input_output_aliases=alias,
        )(x2d, w1_t, w2_t, pool_mat, bcast_mat)
        if n_pad != N:
            out2d = out2d[:N]
        return out2d.reshape(N, C, L)

    # Lane-dense (or helper-too-large) L: tile (nb, C, L) blocks over the batch.
    nb, n_pad = _choose_block(N, bytes_per_sample, block_target_bytes,
                              sublane_multiple=1)
    xp = x if n_pad == N else jnp.pad(x, ((0, n_pad - N), (0, 0), (0, 0)))
    block_bytes = nb * bytes_per_sample
    out = pl.pallas_call(
        _make_ncl_kernel(1.0 / L),
        out_shape=jax.ShapeDtypeStruct((n_pad, C, L), x.dtype),
        grid_spec=pl.GridSpec(
            grid=(n_pad // nb,),
            in_specs=[
                pl.BlockSpec((nb, C, L), lambda i: (i, 0, 0)),
                pl.BlockSpec(w1_t.shape, lambda i: (0, 0)),
                pl.BlockSpec(w2_t.shape, lambda i: (0, 0)),
            ],
            out_specs=pl.BlockSpec((nb, C, L), lambda i: (i, 0, 0)),
        ),
        compiler_params=_compiler_params(block_bytes),
        cost_estimate=cost,
        input_output_aliases=alias,
    )(xp, w1_t, w2_t)
    return out if n_pad == N else out[:N]


# ---------------------------------------------------------------------------
# Reference + self-test
# ---------------------------------------------------------------------------
def _reference(x, w1_t, w2_t):
    xf = x.astype(jnp.float32)
    pooled = jnp.mean(xf, axis=-1)
    h = jnp.maximum(pooled @ w1_t, 0.0)
    alpha = jax.nn.sigmoid(h @ w2_t)
    return (xf * (1.0 + alpha[:, :, None])).astype(x.dtype)


if __name__ == "__main__":
    key = jax.random.PRNGKey(0)
    kx1, kx2, kx3, k1, k2 = jax.random.split(key, 5)

    # Module defaults: nChannels=32, reduction=16 -> hidden=2.
    C, red = 32, 16
    H = C // red
    # PyTorch Linear(in, out) stores weight (out, in) and computes y = x @ W^T;
    # the kernel takes W^T (shape (in, out)).
    w1 = jax.random.normal(k1, (H, C), dtype=jnp.float32) * (1.0 / jnp.sqrt(C))
    w2 = jax.random.normal(k2, (C, H), dtype=jnp.float32) * (1.0 / jnp.sqrt(H))
    w1_t, w2_t = w1.T, w2.T

    # Case 1: module-default small shape -> flat lane-dense path, single grid step.
    N1, L1 = 16, 16
    x1 = jax.random.normal(kx1, (N1, C, L1), dtype=jnp.float32)
    out1 = jax.block_until_ready(res_se_layer_1d(x1, w1_t, w2_t))
    ref1 = _reference(x1, w1_t, w2_t)
    assert out1.shape == x1.shape
    assert jnp.allclose(out1, ref1, atol=1e-4, rtol=1e-4), float(
        jnp.max(jnp.abs(out1 - ref1)))

    # Case 2: L a multiple of 128 -> native NCL path (L on lanes).
    N2, L2 = 4, 128
    x2 = jax.random.normal(kx2, (N2, C, L2), dtype=jnp.float32)
    out2 = jax.block_until_ready(res_se_layer_1d(x2, w1_t, w2_t))
    ref2 = _reference(x2, w1_t, w2_t)
    assert out2.shape == x2.shape
    assert jnp.allclose(out2, ref2, atol=1e-4, rtol=1e-4), float(
        jnp.max(jnp.abs(out2 - ref2)))

    # Case 3: awkward batch (N=20) with a tiny block target -> exercises the
    # sublane-padded, multi-step flat path (no NCL fallback).
    N3, L3 = 20, 16
    x3 = jax.random.normal(kx3, (N3, C, L3), dtype=jnp.float32)
    out3 = jax.block_until_ready(
        res_se_layer_1d(x3, w1_t, w2_t, block_target_bytes=16 << 10))
    ref3 = _reference(x3, w1_t, w2_t)
    assert out3.shape == x3.shape
    assert jnp.allclose(out3, ref3, atol=1e-4, rtol=1e-4), float(
        jnp.max(jnp.abs(out3 - ref3)))

    # Case 4: bf16 input -> f32 pool/MLP, native-dtype final multiply/store.
    x4 = x1.astype(jnp.bfloat16)
    out4 = jax.block_until_ready(res_se_layer_1d(x4, w1_t, w2_t))
    ref4 = _reference(x4, w1_t, w2_t)
    assert out4.shape == x4.shape
    assert jnp.allclose(out4.astype(jnp.float32), ref4.astype(jnp.float32),
                        atol=1e-1, rtol=5e-2)

    print("KERNEL_OK")
</pallas_src>

<mosaic_0001>
module attributes {stable_mosaic.version = 11 : i64} {
  func.func @kernel(%arg0: i32, %arg1: memref<16x512xf32, #tpu.memory_space<vmem>>, %arg2: memref<32x2xf32, #tpu.memory_space<vmem>>, %arg3: memref<2x32xf32, #tpu.memory_space<vmem>>, %arg4: memref<512x32xf32, #tpu.memory_space<vmem>>, %arg5: memref<32x512xf32, #tpu.memory_space<vmem>>, %arg6: memref<16x512xf32, #tpu.memory_space<vmem>>) attributes {dimension_semantics = [#tpu.dimension_semantics<parallel>], iteration_bounds = array<i64: 1>, scalar_prefetch = 0 : i64, scratch_operands = 0 : i64, tpu.core_type = #tpu.core_type<tc>, window_params = [{transform_indices = @transform_0, window_bounds = array<i64: 16, 512>}, {pipeline_mode = #tpu.pipeline_mode<synchronous>, transform_indices = @transform_1, window_bounds = array<i64: 32, 2>}, {pipeline_mode = #tpu.pipeline_mode<synchronous>, transform_indices = @transform_2, window_bounds = array<i64: 2, 32>}, {pipeline_mode = #tpu.pipeline_mode<synchronous>, transform_indices = @transform_3, window_bounds = array<i64: 512, 32>}, {pipeline_mode = #tpu.pipeline_mode<synchronous>, transform_indices = @transform_4, window_bounds = array<i64: 32, 512>}, {transform_indices = @transform_5, window_bounds = array<i64: 16, 512>}]} {
    %c0 = arith.constant 0 : index
    %c0_0 = arith.constant 0 : index
    %0 = vector.load %arg1[%c0, %c0_0] : memref<16x512xf32, #tpu.memory_space<vmem>>, vector<16x512xf32>
    %c0_1 = arith.constant 0 : index
    %c0_2 = arith.constant 0 : index
    %1 = vector.load %arg4[%c0_1, %c0_2] : memref<512x32xf32, #tpu.memory_space<vmem>>, vector<512x32xf32>
    %cst = arith.constant dense<0.000000e+00> : vector<16x32xf32>
    %2 = tpu.matmul %0, %1, %cst {dimension_numbers = #tpu.dot_dimension_numbers<[1], [0], [0], [1], [0, 0, 1, 1], [], []>} : vector<16x512xf32>, vector<512x32xf32>, vector<16x32xf32> -> vector<16x32xf32>
    %cst_3 = arith.constant 6.250000e-02 : f32
    %3 = vector.broadcast %cst_3 : f32 to vector<16x32xf32>
    %4 = arith.mulf %2, %3 : vector<16x32xf32>
    %c0_4 = arith.constant 0 : index
    %c0_5 = arith.constant 0 : index
    %5 = vector.load %arg2[%c0_4, %c0_5] : memref<32x2xf32, #tpu.memory_space<vmem>>, vector<32x2xf32>
    %cst_6 = arith.constant dense<0.000000e+00> : vector<16x2xf32>
    %6 = tpu.matmul %4, %5, %cst_6 {dimension_numbers = #tpu.dot_dimension_numbers<[1], [0], [0], [1], [0, 0, 1, 1], [], []>} : vector<16x32xf32>, vector<32x2xf32>, vector<16x2xf32> -> vector<16x2xf32>
    %cst_7 = arith.constant 0.000000e+00 : f32
    %7 = vector.broadcast %cst_7 : f32 to vector<16x2xf32>
    %8 = arith.maximumf %6, %7 : vector<16x2xf32>
    %c0_8 = arith.constant 0 : index
    %c0_9 = arith.constant 0 : index
    %9 = vector.load %arg3[%c0_8, %c0_9] : memref<2x32xf32, #tpu.memory_space<vmem>>, vector<2x32xf32>
    %cst_10 = arith.constant dense<0.000000e+00> : vector<16x32xf32>
    %10 = tpu.matmul %8, %9, %cst_10 {dimension_numbers = #tpu.dot_dimension_numbers<[1], [0], [0], [1], [0, 0, 1, 1], [], []>} : vector<16x2xf32>, vector<2x32xf32>, vector<16x32xf32> -> vector<16x32xf32>
    %11 = arith.negf %10 : vector<16x32xf32>
    %12 = math.exp %11 : vector<16x32xf32>
    %cst_11 = arith.constant 1.000000e+00 : f32
    %13 = vector.broadcast %cst_11 : f32 to vector<16x32xf32>
    %14 = arith.addf %13, %12 : vector<16x32xf32>
    %15 = arith.divf %13, %14 : vector<16x32xf32>
    %cst_12 = arith.constant 1.000000e+00 : f32
    %16 = vector.broadcast %cst_12 : f32 to vector<16x32xf32>
    %17 = arith.addf %16, %15 : vector<16x32xf32>
    %c0_13 = arith.constant 0 : index
    %c0_14 = arith.constant 0 : index
    %18 = vector.load %arg5[%c0_13, %c0_14] : memref<32x512xf32, #tpu.memory_space<vmem>>, vector<32x512xf32>
    %cst_15 = arith.constant dense<0.000000e+00> : vector<16x512xf32>
    %19 = tpu.matmul %17, %18, %cst_15 {dimension_numbers = #tpu.dot_dimension_numbers<[1], [0], [0], [1], [0, 0, 1, 1], [], []>} : vector<16x32xf32>, vector<32x512xf32>, vector<16x512xf32> -> vector<16x512xf32>
    %20 = arith.mulf %0, %19 : vector<16x512xf32>
    %c0_16 = arith.constant 0 : index
    %c0_17 = arith.constant 0 : index
    %21 = vector.load %arg6[%c0_16, %c0_17] : memref<16x512xf32, #tpu.memory_space<vmem>>, vector<16x512xf32>
    tpu.vector_store %arg6[%c0_16, %c0_17], %20 {strides = array<i32>} : memref<16x512xf32, #tpu.memory_space<vmem>>, vector<16x512xf32>,
    return
  }
  func.func @transform_0(%arg0: i32) -> (i32, i32) {
    %c0_i32 = arith.constant 0 : i32
    %c0_i32_0 = arith.constant 0 : i32
    return %arg0, %c0_i32 : i32, i32
  }
  func.func @transform_1(%arg0: i32) -> (i32, i32) {
    %c0_i32 = arith.constant 0 : i32
    %c0_i32_0 = arith.constant 0 : i32
    %c0_i32_1 = arith.constant 0 : i32
    return %c0_i32, %c0_i32_0 : i32, i32
  }
  func.func @transform_2(%arg0: i32) -> (i32, i32) {
    %c0_i32 = arith.constant 0 : i32
    %c0_i32_0 = arith.constant 0 : i32
    %c0_i32_1 = arith.constant 0 : i32
    return %c0_i32, %c0_i32_0 : i32, i32
  }
  func.func @transform_3(%arg0: i32) -> (i32, i32) {
    %c0_i32 = arith.constant 0 : i32
    %c0_i32_0 = arith.constant 0 : i32
    %c0_i32_1 = arith.constant 0 : i32
    return %c0_i32, %c0_i32_0 : i32, i32
  }
  func.func @transform_4(%arg0: i32) -> (i32, i32) {
    %c0_i32 = arith.constant 0 : i32
    %c0_i32_0 = arith.constant 0 : i32
    %c0_i32_1 = arith.constant 0 : i32
    return %c0_i32, %c0_i32_0 : i32, i32
  }
  func.func @transform_5(%arg0: i32) -> (i32, i32) {
    %c0_i32 = arith.constant 0 : i32
    %c0_i32_0 = arith.constant 0 : i32
    return %arg0, %c0_i32 : i32, i32
  }
}

</mosaic_0001>

<llo_original>
// kernel: tpu_custom_call.1
$region0: #{tpu_custom_call.1}
  #allocation0 [shape = 'u32[]', space=smem, size = 0x4, offset = 0x4, fixed_abs, tag = 'smem constant byte address 0x4 - core index']
  #allocation1 [shape = 'u32[144,128]{1,0:T(1,128)}', space=vmem, size = 0x12000, scoped, tag = 'internal scratch']
  %s0 = inlined_call_operand.vmem [shape: f32[16,512], index: 0, kind: input, shape index: {}]
  %s1 = inlined_call_operand.vmem [shape: f32[32,2], index: 1, kind: input, shape index: {}]
  %s2 = inlined_call_operand.vmem [shape: f32[2,32], index: 2, kind: input, shape index: {}]
  %s3 = inlined_call_operand.vmem [shape: f32[512,32], index: 3, kind: input, shape index: {}]
  %s4 = inlined_call_operand.vmem [shape: f32[32,512], index: 4, kind: input, shape index: {}]
  %s5 = inlined_call_operand.hbm [shape: f32[16,512], index: 5, kind: output, shape index: {}]
  %s6 = sld [smem:[#allocation0]]
  $region30: #{tpu_custom_call.1} parent=0
    _
  %s8 = ssub.s32 1, %s6
  %s9 = scalar_select 0, %s8, %s6
  $region1: #{tpu_custom_call.1} parent=0
    #allocation2 [shape = 'u8[32768]{0}', space=vmem, size = 0x8000, scoped, tag = 'output window, operand 0, single buffered']
    #allocation3 [shape = 's32[1]{0}', space=sflag, size = 0x4, scoped, tag = 'scoped memory for tpu_custom_call.1']
    %10 = vsyncpa [#allocation3], 0
    // Predicated region
    $region2: #{tpu_custom_call.1} parent=1 // pred_check
      _
    $region3: #{tpu_custom_call.1} parent=1 // pred_check_branch
      %12 = sbr.rel (0) target = $region5
    $region4: #{tpu_custom_call.1} parent=1 // pred_region
      _
    $region5: #{tpu_custom_call.1} parent=1 // pred_fallthru
      _
    // Predicated region
    $region6: #{tpu_custom_call.1} parent=1 // pred_check
      _
    $region7: #{tpu_custom_call.1} parent=1 // pred_check_branch
      %14 = sbr.rel (0) target = $region9
    $region8: #{tpu_custom_call.1} parent=1 // pred_region
      _
    $region9: #{tpu_custom_call.1} parent=1 // pred_fallthru
      _
    // Predicated region
    $region10: #{tpu_custom_call.1} parent=1 // pred_check
      _
    $region11: #{tpu_custom_call.1} parent=1 // pred_check_branch
      %16 = sbr.rel (0) target = $region13
    $region12: #{tpu_custom_call.1} parent=1 // pred_region
      _
    $region13: #{tpu_custom_call.1} parent=1 // pred_fallthru
      _
    // Predicated region
    $region14: #{tpu_custom_call.1} parent=1 // pred_check
      _
    $region15: #{tpu_custom_call.1} parent=1 // pred_check_branch
      %18 = sbr.rel (0) target = $region17
    $region16: #{tpu_custom_call.1} parent=1 // pred_region
      _
    $region17: #{tpu_custom_call.1} parent=1 // pred_fallthru
      _
    // Predicated region
    $region18: #{tpu_custom_call.1} parent=1 // pred_check
      _
    $region19: #{tpu_custom_call.1} parent=1 // pred_check_branch
      %20 = sbr.rel (0) target = $region21
    $region20: #{tpu_custom_call.1} parent=1 // pred_region
      _
    $region21: #{tpu_custom_call.1} parent=1 // pred_fallthru
      _
    %v21 = vld [vmem:[%s0] sm:$0xff]
    %v22 = vld [vmem:[%s0 + $0x8] sm:$0xff]
    %v23 = vld [vmem:[%s0 + $0x10] sm:$0xff]
    %v24 = vld [vmem:[%s0 + $0x18] sm:$0xff]
    %v25 = vld [vmem:[%s0 + $0x20] sm:$0xff]
    %v26 = vld [vmem:[%s0 + $0x28] sm:$0xff]
    %v27 = vld [vmem:[%s0 + $0x30] sm:$0xff]
    %v28 = vld [vmem:[%s0 + $0x38] sm:$0xff]
    %v29 = vld [vmem:[%s3] sm:$0xff]
    %v30 = vld [vmem:[%s3 + $0x8] sm:$0xff]
    %v31 = vld [vmem:[%s3 + $0x10] sm:$0xff]
    %v32 = vld [vmem:[%s3 + $0x18] sm:$0xff]
    %v33 = vld [vmem:[%s3 + $0x20] sm:$0xff]
    %v34 = vld [vmem:[%s3 + $0x28] sm:$0xff]
    %v35 = vld [vmem:[%s3 + $0x30] sm:$0xff]
    %v36 = vld [vmem:[%s3 + $0x38] sm:$0xff]
    %v37 = vld [vmem:[%s3 + $0x40] sm:$0xff]
    %v38 = vld [vmem:[%s3 + $0x48] sm:$0xff]
    %v39 = vld [vmem:[%s3 + $0x50] sm:$0xff]
    %v40 = vld [vmem:[%s3 + $0x58] sm:$0xff]
    %v41 = vld [vmem:[%s3 + $0x60] sm:$0xff]
    %v42 = vld [vmem:[%s3 + $0x68] sm:$0xff]
    %v43 = vld [vmem:[%s3 + $0x70] sm:$0xff]
    %v44 = vld [vmem:[%s3 + $0x78] sm:$0xff]
    %v45 = vld [vmem:[%s3 + $0x80] sm:$0xff]
    %v46 = vld [vmem:[%s3 + $0x88] sm:$0xff]
    %v47 = vld [vmem:[%s3 + $0x90] sm:$0xff]
    %v48 = vld [vmem:[%s3 + $0x98] sm:$0xff]
    %v49 = vld [vmem:[%s3 + $0xa0] sm:$0xff]
    %v50 = vld [vmem:[%s3 + $0xa8] sm:$0xff]
    %v51 = vld [vmem:[%s3 + $0xb0] sm:$0xff]
    %v52 = vld [vmem:[%s3 + $0xb8] sm:$0xff]
    %v53 = vld [vmem:[%s3 + $0xc0] sm:$0xff]
    %v54 = vld [vmem:[%s3 + $0xc8] sm:$0xff]
    %v55 = vld [vmem:[%s3 + $0xd0] sm:$0xff]
    %v56 = vld [vmem:[%s3 + $0xd8] sm:$0xff]
    %v57 = vld [vmem:[%s3 + $0xe0] sm:$0xff]
    %v58 = vld [vmem:[%s3 + $0xe8] sm:$0xff]
    %v59 = vld [vmem:[%s3 + $0xf0] sm:$0xff]
    %v60 = vld [vmem:[%s3 + $0xf8] sm:$0xff]
    %v61 = vld [vmem:[%s3 + $0x100] sm:$0xff]
    %v62 = vld [vmem:[%s3 + $0x108] sm:$0xff]
    %v63 = vld [vmem:[%s3 + $0x110] sm:$0xff]
    %v64 = vld [vmem:[%s3 + $0x118] sm:$0xff]
    %v65 = vld [vmem:[%s3 + $0x120] sm:$0xff]
    %v66 = vld [vmem:[%s3 + $0x128] sm:$0xff]
    %v67 = vld [vmem:[%s3 + $0x130] sm:$0xff]
    %v68 = vld [vmem:[%s3 + $0x138] sm:$0xff]
    %v69 = vld [vmem:[%s3 + $0x140] sm:$0xff]
    %v70 = vld [vmem:[%s3 + $0x148] sm:$0xff]
    %v71 = vld [vmem:[%s3 + $0x150] sm:$0xff]
    %v72 = vld [vmem:[%s3 + $0x158] sm:$0xff]
    %v73 = vld [vmem:[%s3 + $0x160] sm:$0xff]
    %v74 = vld [vmem:[%s3 + $0x168] sm:$0xff]
    %v75 = vld [vmem:[%s3 + $0x170] sm:$0xff]
    %v76 = vld [vmem:[%s3 + $0x178] sm:$0xff]
    %v77 = vld [vmem:[%s3 + $0x180] sm:$0xff]
    %v78 = vld [vmem:[%s3 + $0x188] sm:$0xff]
    %v79 = vld [vmem:[%s3 + $0x190] sm:$0xff]
    %v80 = vld [vmem:[%s3 + $0x198] sm:$0xff]
    %v81 = vld [vmem:[%s3 + $0x1a0] sm:$0xff]
    %v82 = vld [vmem:[%s3 + $0x1a8] sm:$0xff]
    %v83 = vld [vmem:[%s3 + $0x1b0] sm:$0xff]
    %v84 = vld [vmem:[%s3 + $0x1b8] sm:$0xff]
    %v85 = vld [vmem:[%s3 + $0x1c0] sm:$0xff]
    %v86 = vld [vmem:[%s3 + $0x1c8] sm:$0xff]
    %v87 = vld [vmem:[%s3 + $0x1d0] sm:$0xff]
    %v88 = vld [vmem:[%s3 + $0x1d8] sm:$0xff]
    %v89 = vld [vmem:[%s3 + $0x1e0] sm:$0xff]
    %v90 = vld [vmem:[%s3 + $0x1e8] sm:$0xff]
    %v91 = vld [vmem:[%s3 + $0x1f0] sm:$0xff]
    %v92 = vld [vmem:[%s3 + $0x1f8] sm:$0xff]
    %93 = vmatprep.subr.mxu0 0.0
    %94 = vmatpush1.msra.mxu0 %v44
    %95 = vmatprep.subr.mxu0 0.0
    %96 = vmatpush1.msra.mxu0 %v43
    %97 = vmatprep.subr.mxu0 0.0
    %98 = vmatpush1.msra.mxu0 %v42
    %99 = vmatprep.subr.mxu0 0.0
    %100 = vmatpush1.msra.mxu0 %v41
    %101 = vmatprep.subr.mxu0 0.0
    %102 = vmatpush1.msra.mxu0 %v40
    %103 = vmatprep.subr.mxu0 0.0
    %104 = vmatpush1.msra.mxu0 %v39
    %105 = vmatprep.subr.mxu0 0.0
    %106 = vmatpush1.msra.mxu0 %v38
    %107 = vmatprep.subr.mxu0 0.0
    %108 = vmatpush1.msra.mxu0 %v37
    %109 = vmatprep.subr.mxu0 0.0
    %110 = vmatpush1.msra.mxu0 %v36
    %111 = vmatprep.subr.mxu0 0.0
    %112 = vmatpush1.msra.mxu0 %v35
    %113 = vmatprep.subr.mxu0 0.0
    %114 = vmatpush1.msra.mxu0 %v34
    %115 = vmatprep.subr.mxu0 0.0
    %116 = vmatpush1.msra.mxu0 %v33
    %117 = vmatprep.subr.mxu0 0.0
    %118 = vmatpush1.msra.mxu0 %v32
    %119 = vmatprep.subr.mxu0 0.0
    %120 = vmatpush1.msra.mxu0 %v31
    %121 = vmatprep.subr.mxu0 0.0
    %122 = vmatpush1.msra.mxu0 %v30
    %123 = vmatprep.subr.mxu0 0.0
    %124 = vmatpush1.msra.mxu0 %v29
    %125 = vmatprep.subr.mxu0 0.0
    %126 = vmatpush2.msra.mxu0 %v60
    %127 = vmatprep.subr.mxu0 0.0
    %128 = vmatpush2.msra.mxu0 %v59
    %129 = vmatprep.subr.mxu0 0.0
    %130 = vmatpush2.msra.mxu0 %v58
    %131 = vmatprep.subr.mxu0 0.0
    %132 = vmatpush2.msra.mxu0 %v57
    %133 = vmatprep.subr.mxu0 0.0
    %134 = vmatpush2.msra.mxu0 %v56
    %135 = vmatprep.subr.mxu0 0.0
    %136 = vmatpush2.msra.mxu0 %v55
    %137 = vmatprep.subr.mxu0 0.0
    %138 = vmatpush2.msra.mxu0 %v54
    %139 = vmatprep.subr.mxu0 0.0
    %140 = vmatpush2.msra.mxu0 %v53
    %141 = vmatprep.subr.mxu0 0.0
    %142 = vmatpush2.msra.mxu0 %v52
    %143 = vmatprep.subr.mxu0 0.0
    %144 = vmatpush2.msra.mxu0 %v51
    %145 = vmatprep.subr.mxu0 0.0
    %146 = vmatpush2.msra.mxu0 %v50
    %147 = vmatprep.subr.mxu0 0.0
    %148 = vmatpush2.msra.mxu0 %v49
    %149 = vmatprep.subr.mxu0 0.0
    %150 = vmatpush2.msra.mxu0 %v48
    %151 = vmatprep.subr.mxu0 0.0
    %152 = vmatpush2.msra.mxu0 %v47
    %153 = vmatprep.subr.mxu0 0.0
    %154 = vmatpush2.msra.mxu0 %v46
    %155 = vmatprep.subr.mxu0 0.0
    %156 = vmatpush2.msra.mxu0 %v45
    %157 = vmatprep.mubr.f32.mxu0 %v22
    %158 = vmatmul.mubr.f32.gmra.mxu0 %v21
    %v159 = vpop.f32.mrf.mxu0
    %v160 = vadd.f32 0.0, %v159
    %v161 = vpop.f32.mrf.mxu0
    %162 = vmatprep.mubr.f32.mxu0 %v26
    %163 = vmatmul.mubr.f32.gmra.mxu0 %v25
    %v164 = vpop.f32.mrf.mxu0
    %v165 = vadd.f32 0.0, %v164
    %v166 = vpop.f32.mrf.mxu0
    %167 = vdwg.mxu0
    %168 = vmatprep.subr.mxu0 0.0
    %169 = vmatpush1.msra.mxu0 %v76
    %170 = vmatprep.subr.mxu0 0.0
    %171 = vmatpush1.msra.mxu0 %v75
    %172 = vmatprep.subr.mxu0 0.0
    %173 = vmatpush1.msra.mxu0 %v74
    %174 = vmatprep.subr.mxu0 0.0
    %175 = vmatpush1.msra.mxu0 %v73
    %176 = vmatprep.subr.mxu0 0.0
    %177 = vmatpush1.msra.mxu0 %v72
    %178 = vmatprep.subr.mxu0 0.0
    %179 = vmatpush1.msra.mxu0 %v71
    %180 = vmatprep.subr.mxu0 0.0
    %181 = vmatpush1.msra.mxu0 %v70
    %182 = vmatprep.subr.mxu0 0.0
    %183 = vmatpush1.msra.mxu0 %v69
    %184 = vmatprep.subr.mxu0 0.0
    %185 = vmatpush1.msra.mxu0 %v68
    %186 = vmatprep.subr.mxu0 0.0
    %187 = vmatpush1.msra.mxu0 %v67
    %188 = vmatprep.subr.mxu0 0.0
    %189 = vmatpush1.msra.mxu0 %v66
    %190 = vmatprep.subr.mxu0 0.0
    %191 = vmatpush1.msra.mxu0 %v65
    %192 = vmatprep.subr.mxu0 0.0
    %193 = vmatpush1.msra.mxu0 %v64
    %194 = vmatprep.subr.mxu0 0.0
    %195 = vmatpush1.msra.mxu0 %v63
    %196 = vmatprep.subr.mxu0 0.0
    %197 = vmatpush1.msra.mxu0 %v62
    %198 = vmatprep.subr.mxu0 0.0
    %199 = vmatpush1.msra.mxu0 %v61
    %200 = vmatprep.subr.mxu0 0.0
    %201 = vmatpush2.msra.mxu0 %v92
    %202 = vmatprep.subr.mxu0 0.0
    %203 = vmatpush2.msra.mxu0 %v91
    %204 = vmatprep.subr.mxu0 0.0
    %205 = vmatpush2.msra.mxu0 %v90
    %206 = vmatprep.subr.mxu0 0.0
    %207 = vmatpush2.msra.mxu0 %v89
    %208 = vmatprep.subr.mxu0 0.0
    %209 = vmatpush2.msra.mxu0 %v88
    %210 = vmatprep.subr.mxu0 0.0
    %211 = vmatpush2.msra.mxu0 %v87
    %212 = vmatprep.subr.mxu0 0.0
    %213 = vmatpush2.msra.mxu0 %v86
    %214 = vmatprep.subr.mxu0 0.0
    %215 = vmatpush2.msra.mxu0 %v85
    %216 = vmatprep.subr.mxu0 0.0
    %217 = vmatpush2.msra.mxu0 %v84
    %218 = vmatprep.subr.mxu0 0.0
    %219 = vmatpush2.msra.mxu0 %v83
    %220 = vmatprep.subr.mxu0 0.0
    %221 = vmatpush2.msra.mxu0 %v82
    %222 = vmatprep.subr.mxu0 0.0
    %223 = vmatpush2.msra.mxu0 %v81
    %224 = vmatprep.subr.mxu0 0.0
    %225 = vmatpush2.msra.mxu0 %v80
    %226 = vmatprep.subr.mxu0 0.0
    %227 = vmatpush2.msra.mxu0 %v79
    %228 = vmatprep.subr.mxu0 0.0
    %229 = vmatpush2.msra.mxu0 %v78
    %230 = vmatprep.subr.mxu0 0.0
    %231 = vmatpush2.msra.mxu0 %v77
    %232 = vmatprep.mubr.f32.mxu0 %v24
    %233 = vmatmul.mubr.f32.gmra.mxu0 %v23
    %v234 = vpop.f32.mrf.mxu0
    %v235 = vadd.f32 %v160, %v234
    %v236 = vpop.f32.mrf.mxu0
    %237 = vmatprep.mubr.f32.mxu0 %v28
    %238 = vmatmul.mubr.f32.gmra.mxu0 %v27
    %v239 = vpop.f32.mrf.mxu0
    %v240 = vadd.f32 %v165, %v239
    %v241 = vpop.f32.mrf.mxu0
    %242 = vdwg.mxu0
    %v243 = vmul.f32 %v235, 0.0625
    %v244 = vmul.f32 %v240, 0.0625
    %v245 = vld [vmem:[%s1] sm:$0xff]
    %v246 = vld [vmem:[%s1 + $0x8] sm:$0xff]
    %v247 = vld [vmem:[%s1 + $0x10] sm:$0xff]
    %v248 = vld [vmem:[%s1 + $0x18] sm:$0xff]
    %vm249 = vcmask 261120
    %v251 = vsel %vm249, %v243, 0
    %v254 = vsel %vm249, %v244, 0
    %256 = vmatprep.subr.mxu0 0.0
    %257 = vmatpush1.msra.mxu0 0.0
    %258 = vmatprep.subr.mxu0 0.0
    %259 = vmatpush1.msra.mxu0 0.0
    %260 = vmatprep.subr.mxu0 0.0
    %261 = vmatpush1.msra.mxu0 0.0
    %262 = vmatprep.subr.mxu0 0.0
    %263 = vmatpush1.msra.mxu0 0.0
    %264 = vmatprep.subr.mxu0 0.0
    %265 = vmatpush1.msra.mxu0 0.0
    %266 = vmatprep.subr.mxu0 0.0
    %267 = vmatpush1.msra.mxu0 0.0
    %268 = vmatprep.subr.mxu0 0.0
    %269 = vmatpush1.msra.mxu0 0.0
    %270 = vmatprep.subr.mxu0 0.0
    %271 = vmatpush1.msra.mxu0 0.0
    %272 = vmatprep.subr.mxu0 0.0
    %273 = vmatpush1.msra.mxu0 0.0
    %274 = vmatprep.subr.mxu0 0.0
    %275 = vmatpush1.msra.mxu0 0.0
    %276 = vmatprep.subr.mxu0 0.0
    %277 = vmatpush1.msra.mxu0 0.0
    %278 = vmatprep.subr.mxu0 0.0
    %279 = vmatpush1.msra.mxu0 0.0
    %280 = vmatprep.subr.mxu0 0.0
    %281 = vmatpush1.msra.mxu0 %v248
    %282 = vmatprep.subr.mxu0 0.0
    %283 = vmatpush1.msra.mxu0 %v247
    %284 = vmatprep.subr.mxu0 0.0
    %285 = vmatpush1.msra.mxu0 %v246
    %286 = vmatprep.subr.mxu0 0.0
    %287 = vmatpush1.msra.mxu0 %v245
    %288 = vmatprep.subr.mxu0 0.0
    %289 = vmatpush2.msra.mxu0 0.0
    %290 = vmatprep.subr.mxu0 0.0
    %291 = vmatpush2.msra.mxu0 0.0
    %292 = vmatprep.subr.mxu0 0.0
    %293 = vmatpush2.msra.mxu0 0.0
    %294 = vmatprep.subr.mxu0 0.0
    %295 = vmatpush2.msra.mxu0 0.0
    %296 = vmatprep.subr.mxu0 0.0
    %297 = vmatpush2.msra.mxu0 0.0
    %298 = vmatprep.subr.mxu0 0.0
    %299 = vmatpush2.msra.mxu0 0.0
    %300 = vmatprep.subr.mxu0 0.0
    %301 = vmatpush2.msra.mxu0 0.0
    %302 = vmatprep.subr.mxu0 0.0
    %303 = vmatpush2.msra.mxu0 0.0
    %304 = vmatprep.subr.mxu0 0.0
    %305 = vmatpush2.msra.mxu0 0.0
    %306 = vmatprep.subr.mxu0 0.0
    %307 = vmatpush2.msra.mxu0 0.0
    %308 = vmatprep.subr.mxu0 0.0
    %309 = vmatpush2.msra.mxu0 0.0
    %310 = vmatprep.subr.mxu0 0.0
    %311 = vmatpush2.msra.mxu0 0.0
    %312 = vmatprep.subr.mxu0 0.0
    %313 = vmatpush2.msra.mxu0 0.0
    %314 = vmatprep.subr.mxu0 0.0
    %315 = vmatpush2.msra.mxu0 0.0
    %316 = vmatprep.subr.mxu0 0.0
    %317 = vmatpush2.msra.mxu0 0.0
    %318 = vmatprep.subr.mxu0 0.0
    %319 = vmatpush2.msra.mxu0 0.0
    %320 = vmatprep.mubr.f32.mxu0 0.0
    %321 = vmatmul.mubr.f32.gmra.mxu0 %v251
    %v322 = vpop.f32.mrf.mxu0
    %v323 = vadd.f32 0.0, %v322
    %v324 = vpop.f32.mrf.mxu0
    %325 = vmatprep.mubr.f32.mxu0 0.0
    %326 = vmatmul.mubr.f32.gmra.mxu0 %v254
    %v327 = vpop.f32.mrf.mxu0
    %v328 = vadd.f32 0.0, %v327
    %v329 = vpop.f32.mrf.mxu0
    %330 = vdwg.mxu0
    %v331 = vmax.f32 %v323, 0.0
    %v332 = vmax.f32 %v328, 0.0
    %v333 = vld [vmem:[%s2] sm:$0x3]
    %vm334 = vcmask 15360
    %v336 = vsel %vm334, %v331, 0
    %v339 = vsel %vm334, %v332, 0
    %vm341 = vcmask 1041408
    %v343 = vsel %vm341, %v333, 0
    %345 = vmatprep.subr.mxu0 0.0
    %346 = vmatpush1.msra.mxu0 0.0
    %347 = vmatprep.subr.mxu0 0.0
    %348 = vmatpush1.msra.mxu0 0.0
    %349 = vmatprep.subr.mxu0 0.0
    %350 = vmatpush1.msra.mxu0 0.0
    %351 = vmatprep.subr.mxu0 0.0
    %352 = vmatpush1.msra.mxu0 0.0
    %353 = vmatprep.subr.mxu0 0.0
    %354 = vmatpush1.msra.mxu0 0.0
    %355 = vmatprep.subr.mxu0 0.0
    %356 = vmatpush1.msra.mxu0 0.0
    %357 = vmatprep.subr.mxu0 0.0
    %358 = vmatpush1.msra.mxu0 0.0
    %359 = vmatprep.subr.mxu0 0.0
    %360 = vmatpush1.msra.mxu0 0.0
    %361 = vmatprep.subr.mxu0 0.0
    %362 = vmatpush1.msra.mxu0 0.0
    %363 = vmatprep.subr.mxu0 0.0
    %364 = vmatpush1.msra.mxu0 0.0
    %365 = vmatprep.subr.mxu0 0.0
    %366 = vmatpush1.msra.mxu0 0.0
    %367 = vmatprep.subr.mxu0 0.0
    %368 = vmatpush1.msra.mxu0 0.0
    %369 = vmatprep.subr.mxu0 0.0
    %370 = vmatpush1.msra.mxu0 0.0
    %371 = vmatprep.subr.mxu0 0.0
    %372 = vmatpush1.msra.mxu0 0.0
    %373 = vmatprep.subr.mxu0 0.0
    %374 = vmatpush1.msra.mxu0 0.0
    %375 = vmatprep.subr.mxu0 0.0
    %376 = vmatpush1.msra.mxu0 %v343
    %377 = vmatprep.subr.mxu0 0.0
    %378 = vmatpush2.msra.mxu0 0.0
    %379 = vmatprep.subr.mxu0 0.0
    %380 = vmatpush2.msra.mxu0 0.0
    %381 = vmatprep.subr.mxu0 0.0
    %382 = vmatpush2.msra.mxu0 0.0
    %383 = vmatprep.subr.mxu0 0.0
    %384 = vmatpush2.msra.mxu0 0.0
    %385 = vmatprep.subr.mxu0 0.0
    %386 = vmatpush2.msra.mxu0 0.0
    %387 = vmatprep.subr.mxu0 0.0
    %388 = vmatpush2.msra.mxu0 0.0
    %389 = vmatprep.subr.mxu0 0.0
    %390 = vmatpush2.msra.mxu0 0.0
    %391 = vmatprep.subr.mxu0 0.0
    %392 = vmatpush2.msra.mxu0 0.0
    %393 = vmatprep.subr.mxu0 0.0
    %394 = vmatpush2.msra.mxu0 0.0
    %395 = vmatprep.subr.mxu0 0.0
    %396 = vmatpush2.msra.mxu0 0.0
    %397 = vmatprep.subr.mxu0 0.0
    %398 = vmatpush2.msra.mxu0 0.0
    %399 = vmatprep.subr.mxu0 0.0
    %400 = vmatpush2.msra.mxu0 0.0
    %401 = vmatprep.subr.mxu0 0.0
    %402 = vmatpush2.msra.mxu0 0.0
    %403 = vmatprep.subr.mxu0 0.0
    %404 = vmatpush2.msra.mxu0 0.0
    %405 = vmatprep.subr.mxu0 0.0
    %406 = vmatpush2.msra.mxu0 0.0
    %407 = vmatprep.subr.mxu0 0.0
    %408 = vmatpush2.msra.mxu0 0.0
    %409 = vmatprep.mubr.f32.mxu0 0.0
    %410 = vmatmul.mubr.f32.gmra.mxu0 %v336
    %v411 = vpop.f32.mrf.mxu0
    %v412 = vadd.f32 0.0, %v411
    %v413 = vpop.f32.mrf.mxu0
    %414 = vmatprep.mubr.f32.mxu0 0.0
    %415 = vmatmul.mubr.f32.gmra.mxu0 %v339
    %v416 = vpop.f32.mrf.mxu0
    %v417 = vadd.f32 0.0, %v416
    %v418 = vpop.f32.mrf.mxu0
    %419 = vdwg.mxu0
    %v420 = vxor.u32 %v412, 2147483648
    %v421 = vxor.u32 %v417, 2147483648
    %v422 = vmul.f32 %v420, 1.442695
    %v423 = vpow.pop %v422
    %v424 = vmul.f32 %v421, 1.442695
    %v425 = vpow.pop %v424
    %v426 = vadd.f32 %v423, 1.0
    %v427 = vadd.f32 %v425, 1.0
    %v428 = vrcp.pop %v426
    %v429 = vmul.f32 1.0, %v428
    %v430 = vrcp.pop %v427
    %v431 = vmul.f32 1.0, %v430
    %v432 = vadd.f32 %v429, 1.0
    %v433 = vadd.f32 %v431, 1.0
    %v434 = vld [vmem:[%s4] sm:$0xff]
    %v435 = vld [vmem:[%s4 + $0x8] sm:$0xff]
    %v436 = vld [vmem:[%s4 + $0x10] sm:$0xff]
    %v437 = vld [vmem:[%s4 + $0x18] sm:$0xff]
    %v438 = vld [vmem:[%s4 + $0x20] sm:$0xff]
    %v439 = vld [vmem:[%s4 + $0x28] sm:$0xff]
    %v440 = vld [vmem:[%s4 + $0x30] sm:$0xff]
    %v441 = vld [vmem:[%s4 + $0x38] sm:$0xff]
    %v442 = vld [vmem:[%s4 + $0x40] sm:$0xff]
    %v443 = vld [vmem:[%s4 + $0x48] sm:$0xff]
    %v444 = vld [vmem:[%s4 + $0x50] sm:$0xff]
    %v445 = vld [vmem:[%s4 + $0x58] sm:$0xff]
    %v446 = vld [vmem:[%s4 + $0x60] sm:$0xff]
    %v447 = vld [vmem:[%s4 + $0x68] sm:$0xff]
    %v448 = vld [vmem:[%s4 + $0x70] sm:$0xff]
    %v449 = vld [vmem:[%s4 + $0x78] sm:$0xff]
    %v451 = vsel %vm249, %v432, 0
    %v454 = vsel %vm249, %v433, 0
    %456 = vmatprep.subr.mxu0 0.0
    %457 = vmatpush1.msra.mxu0 0.0
    %458 = vmatprep.subr.mxu0 0.0
    %459 = vmatpush1.msra.mxu0 0.0
    %460 = vmatprep.subr.mxu0 0.0
    %461 = vmatpush1.msra.mxu0 0.0
    %462 = vmatprep.subr.mxu0 0.0
    %463 = vmatpush1.msra.mxu0 0.0
    %464 = vmatprep.subr.mxu0 0.0
    %465 = vmatpush1.msra.mxu0 0.0
    %466 = vmatprep.subr.mxu0 0.0
    %467 = vmatpush1.msra.mxu0 0.0
    %468 = vmatprep.subr.mxu0 0.0
    %469 = vmatpush1.msra.mxu0 0.0
    %470 = vmatprep.subr.mxu0 0.0
    %471 = vmatpush1.msra.mxu0 0.0
    %472 = vmatprep.subr.mxu0 0.0
    %473 = vmatpush1.msra.mxu0 0.0
    %474 = vmatprep.subr.mxu0 0.0
    %475 = vmatpush1.msra.mxu0 0.0
    %476 = vmatprep.subr.mxu0 0.0
    %477 = vmatpush1.msra.mxu0 0.0
    %478 = vmatprep.subr.mxu0 0.0
    %479 = vmatpush1.msra.mxu0 0.0
    %480 = vmatprep.subr.mxu0 %v447
    %481 = vmatpush1.msra.mxu0 %v446
    %482 = vmatprep.subr.mxu0 %v443
    %483 = vmatpush1.msra.mxu0 %v442
    %484 = vmatprep.subr.mxu0 %v439
    %485 = vmatpush1.msra.mxu0 %v438
    %486 = vmatprep.subr.mxu0 %v435
    %487 = vmatpush1.msra.mxu0 %v434
    %488 = vmatprep.subr.mxu0 0.0
    %489 = vmatpush2.msra.mxu0 0.0
    %490 = vmatprep.subr.mxu0 0.0
    %491 = vmatpush2.msra.mxu0 0.0
    %492 = vmatprep.subr.mxu0 0.0
    %493 = vmatpush2.msra.mxu0 0.0
    %494 = vmatprep.subr.mxu0 0.0
    %495 = vmatpush2.msra.mxu0 0.0
    %496 = vmatprep.subr.mxu0 0.0
    %497 = vmatpush2.msra.mxu0 0.0
    %498 = vmatprep.subr.mxu0 0.0
    %499 = vmatpush2.msra.mxu0 0.0
    %500 = vmatprep.subr.mxu0 0.0
    %501 = vmatpush2.msra.mxu0 0.0
    %502 = vmatprep.subr.mxu0 0.0
    %503 = vmatpush2.msra.mxu0 0.0
    %504 = vmatprep.subr.mxu0 0.0
    %505 = vmatpush2.msra.mxu0 0.0
    %506 = vmatprep.subr.mxu0 0.0
    %507 = vmatpush2.msra.mxu0 0.0
    %508 = vmatprep.subr.mxu0 0.0
    %509 = vmatpush2.msra.mxu0 0.0
    %510 = vmatprep.subr.mxu0 0.0
    %511 = vmatpush2.msra.mxu0 0.0
    %512 = vmatprep.subr.mxu0 0.0
    %513 = vmatpush2.msra.mxu0 0.0
    %514 = vmatprep.subr.mxu0 0.0
    %515 = vmatpush2.msra.mxu0 0.0
    %516 = vmatprep.subr.mxu0 0.0
    %517 = vmatpush2.msra.mxu0 0.0
    %518 = vmatprep.subr.mxu0 0.0
    %519 = vmatpush2.msra.mxu0 0.0
    %520 = vmatprep.mubr.f32.mxu0 0.0
    %521 = vmatmul.mubr.f32.gmra.mxu0 %v451
    %v522 = vpop.f32.mrf.mxu0
    %v523 = vadd.f32 0.0, %v522
    %v524 = vpop.f32.mrf.mxu0
    %v525 = vadd.f32 0.0, %v524
    %526 = vmatprep.mubr.f32.mxu0 0.0
    %527 = vmatmul.mubr.f32.gmra.mxu0 %v454
    %v528 = vpop.f32.mrf.mxu0
    %v529 = vadd.f32 0.0, %v528
    %v530 = vpop.f32.mrf.mxu0
    %v531 = vadd.f32 0.0, %v530
    %532 = vdwg.mxu0
    %533 = vmatprep.subr.mxu0 0.0
    %534 = vmatpush1.msra.mxu0 0.0
    %535 = vmatprep.subr.mxu0 0.0
    %536 = vmatpush1.msra.mxu0 0.0
    %537 = vmatprep.subr.mxu0 0.0
    %538 = vmatpush1.msra.mxu0 0.0
    %539 = vmatprep.subr.mxu0 0.0
    %540 = vmatpush1.msra.mxu0 0.0
    %541 = vmatprep.subr.mxu0 0.0
    %542 = vmatpush1.msra.mxu0 0.0
    %543 = vmatprep.subr.mxu0 0.0
    %544 = vmatpush1.msra.mxu0 0.0
    %545 = vmatprep.subr.mxu0 0.0
    %546 = vmatpush1.msra.mxu0 0.0
    %547 = vmatprep.subr.mxu0 0.0
    %548 = vmatpush1.msra.mxu0 0.0
    %549 = vmatprep.subr.mxu0 0.0
    %550 = vmatpush1.msra.mxu0 0.0
    %551 = vmatprep.subr.mxu0 0.0
    %552 = vmatpush1.msra.mxu0 0.0
    %553 = vmatprep.subr.mxu0 0.0
    %554 = vmatpush1.msra.mxu0 0.0
    %555 = vmatprep.subr.mxu0 0.0
    %556 = vmatpush1.msra.mxu0 0.0
    %557 = vmatprep.subr.mxu0 %v449
    %558 = vmatpush1.msra.mxu0 %v448
    %559 = vmatprep.subr.mxu0 %v445
    %560 = vmatpush1.msra.mxu0 %v444
    %561 = vmatprep.subr.mxu0 %v441
    %562 = vmatpush1.msra.mxu0 %v440
    %563 = vmatprep.subr.mxu0 %v437
    %564 = vmatpush1.msra.mxu0 %v436
    %565 = vmatprep.subr.mxu0 0.0
    %566 = vmatpush2.msra.mxu0 0.0
    %567 = vmatprep.subr.mxu0 0.0
    %568 = vmatpush2.msra.mxu0 0.0
    %569 = vmatprep.subr.mxu0 0.0
    %570 = vmatpush2.msra.mxu0 0.0
    %571 = vmatprep.subr.mxu0 0.0
    %572 = vmatpush2.msra.mxu0 0.0
    %573 = vmatprep.subr.mxu0 0.0
    %574 = vmatpush2.msra.mxu0 0.0
    %575 = vmatprep.subr.mxu0 0.0
    %576 = vmatpush2.msra.mxu0 0.0
    %577 = vmatprep.subr.mxu0 0.0
    %578 = vmatpush2.msra.mxu0 0.0
    %579 = vmatprep.subr.mxu0 0.0
    %580 = vmatpush2.msra.mxu0 0.0
    %581 = vmatprep.subr.mxu0 0.0
    %582 = vmatpush2.msra.mxu0 0.0
    %583 = vmatprep.subr.mxu0 0.0
    %584 = vmatpush2.msra.mxu0 0.0
    %585 = vmatprep.subr.mxu0 0.0
    %586 = vmatpush2.msra.mxu0 0.0
    %587 = vmatprep.subr.mxu0 0.0
    %588 = vmatpush2.msra.mxu0 0.0
    %589 = vmatprep.subr.mxu0 0.0
    %590 = vmatpush2.msra.mxu0 0.0
    %591 = vmatprep.subr.mxu0 0.0
    %592 = vmatpush2.msra.mxu0 0.0
    %593 = vmatprep.subr.mxu0 0.0
    %594 = vmatpush2.msra.mxu0 0.0
    %595 = vmatprep.subr.mxu0 0.0
    %596 = vmatpush2.msra.mxu0 0.0
    %597 = vmatprep.mubr.f32.mxu0 0.0
    %598 = vmatmul.mubr.f32.gmra.mxu0 %v451
    %v599 = vpop.f32.mrf.mxu0
    %v600 = vadd.f32 0.0, %v599
    %v601 = vpop.f32.mrf.mxu0
    %v602 = vadd.f32 0.0, %v601
    %603 = vmatprep.mubr.f32.mxu0 0.0
    %604 = vmatmul.mubr.f32.gmra.mxu0 %v454
    %v605 = vpop.f32.mrf.mxu0
    %v606 = vadd.f32 0.0, %v605
    %v607 = vpop.f32.mrf.mxu0
    %v608 = vadd.f32 0.0, %v607
    %609 = vdwg.mxu0
    %v610 = vmul.f32 %v21, %v523
    %v611 = vmul.f32 %v22, %v525
    %v612 = vmul.f32 %v23, %v600
    %v613 = vmul.f32 %v24, %v602
    %v614 = vmul.f32 %v25, %v529
    %v615 = vmul.f32 %v26, %v531
    %v616 = vmul.f32 %v27, %v606
    %v617 = vmul.f32 %v28, %v608
    %618 = vst [vmem:[#allocation2] sm:$0xff] %v610
    %619 = vst [vmem:[#allocation2 + $0x8] sm:$0xff] %v611
    %620 = vst [vmem:[#allocation2 + $0x10] sm:$0xff] %v612
    %621 = vst [vmem:[#allocation2 + $0x18] sm:$0xff] %v613
    %622 = vst [vmem:[#allocation2 + $0x20] sm:$0xff] %v614
    %623 = vst [vmem:[#allocation2 + $0x28] sm:$0xff] %v615
    %624 = vst [vmem:[#allocation2 + $0x30] sm:$0xff] %v616
    %625 = vst [vmem:[#allocation2 + $0x38] sm:$0xff] %v617
    // Predicated region
    $region22: #{tpu_custom_call.1} parent=1 // pred_check
      _
    $region23: #{tpu_custom_call.1} parent=1 // pred_check_branch
      %627 = sbr.rel (0) target = $region25
    $region24: #{tpu_custom_call.1} parent=1 // pred_region
      %s629 = ssub.s32 1024, 1024
      %630 = vsyncadd [#allocation3], %s629
      %s631 = sshll.u32 [#allocation2], 4
      %s632 = int_to_ptr.vmem [resolvable:$true] %s631
      %637 = dma.vmem_to_hbm [thread:$0]  %s632, 1024, %s5, [#allocation3], 512, 512, 32
    $region25: #{tpu_custom_call.1} parent=1 // pred_fallthru
      _
    // Predicated region
    $region26: #{tpu_custom_call.1} parent=1 // pred_check
      _
    $region27: #{tpu_custom_call.1} parent=1 // pred_check_branch
      %639 = sbr.rel (0) target = $region29
    $region28: #{tpu_custom_call.1} parent=1 // pred_region
      %640 = dma.done [#allocation3], 1024
    $region29: #{tpu_custom_call.1} parent=1 // pred_fallthru
      _
    %641 = vsyncpa [#allocation3], 1

</llo_original>
